<compile_context>
chip_gen: v6e
topology: v6e:2x2x1
jax: 0.10.0
libtpu: 0.0.40
codegen_flags: <defaults>
</compile_context>

<pallas_src>
import functools

import jax
import jax.numpy as jnp
from jax.experimental import pallas as pl
from jax.experimental.pallas import tpu as pltpu


LANE = 128  # lane-dense feature padding


def _round_up(x, m):
    return ((x + m - 1) // m) * m


def _cdiv(a, b):
    return -(-a // b)


def _pick_batch_tile(batch):
    """Adaptive batch tile.

    Tiny batches: pad only to the f32 sublane quantum (8) -- no 256-row zero tiles.
    Large batches: big tiles (<=512 rows) with >=~4 grid steps so the "parallel"
    batch axis can be sharded across v7x's 2 TensorCores.
    """
    if batch <= 64:
        return _round_up(batch, 8)
    tb = _round_up(_cdiv(batch, 4), 16)   # multiple of 16 so a 2-way split stays aligned
    return min(512, tb)


def _mlp_kernel(x_ref,
                w1_ref, b1_ref, w2_ref, b2_ref, w3_ref, b3_ref,
                w4_ref, b4_ref, w5_ref, b5_ref, w6_ref, b6_ref,
                out_ref, *, n_split):
    """One batch tile: 6 matmuls (bf16 operands, f32 accumulate) + 5 sigmoids.

    The tile is split into `n_split` independent row groups and the layer chain is
    unrolled across them, so the scheduler can overlap MXU work of one group with the
    EUP sigmoid / cast of the other (the per-layer chain is otherwise a pure serial
    MXU -> EUP -> cast dependence that grid pipelining cannot hide)."""
    layers = (
        (w1_ref, b1_ref, True),
        (w2_ref, b2_ref, True),
        (w3_ref, b3_ref, True),
        (w4_ref, b4_ref, True),
        (w5_ref, b5_ref, True),
        (w6_ref, b6_ref, False),
    )
    tb = x_ref.shape[0]
    sub = tb // n_split

    # f32 -> bf16 cast happens here in VMEM instead of a padded HBM copy upstream.
    hs = [x_ref[s * sub:(s + 1) * sub, :].astype(jnp.bfloat16) for s in range(n_split)]

    for w_ref, b_ref, activate in layers:
        w = w_ref[...]                      # bf16, VMEM-resident across all batch tiles
        b = b_ref[...]                      # f32 (1, out), broadcast over rows
        nxt = []
        for h in hs:
            acc = jnp.dot(h, w, preferred_element_type=jnp.float32) + b
            if activate:
                # sigmoid(x) = 0.5*(tanh(x/2)+1): single EUP op; f32 path is v5e-safe.
                acc = (0.5 * (jnp.tanh(0.5 * acc) + 1.0)).astype(jnp.bfloat16)
            nxt.append(acc)
        hs = nxt

    for s in range(n_split):
        out_ref[s * sub:(s + 1) * sub, :] = hs[s].astype(out_ref.dtype)


@jax.jit
def mlp_forward(x_nchw, params):
    """params: list of (W, b) with W shaped (in_features, out_features), f32."""
    B = x_nchw.shape[0]
    x = x_nchw.reshape(B, -1)               # nn.Flatten(); a view, no HBM copy
    input_dims = x.shape[1]

    (w1, b1), (w2, b2), (w3, b3), (w4, b4), (w5, b5), (w6, b6) = params
    hidden_dims = w1.shape[1]
    output_dims = w6.shape[1]

    k_pad = _round_up(input_dims, LANE)     # 1024 -> 1024 (already aligned: no copy)
    h_pad = _round_up(hidden_dims, LANE)    # 32   -> 128
    o_pad = _round_up(output_dims, LANE)    # 10   -> 128

    # Only pad x's feature dim if it is not already lane-aligned; the batch dim is never
    # padded -- ragged last tiles are handled by grid=cdiv + masked partial reads/stores.
    if input_dims != k_pad:
        x = jnp.pad(x, ((0, 0), (0, k_pad - input_dims)))

    tb = _pick_batch_tile(B)
    n_split = 2 if tb >= 128 else 1
    grid = (_cdiv(B, tb),)

    def prep(w, b, in_pad, out_pad):
        w_p = jnp.pad(w, ((0, in_pad - w.shape[0]),
                          (0, out_pad - w.shape[1]))).astype(jnp.bfloat16)
        b_p = jnp.pad(b, ((0, 0), (0, out_pad - b.shape[1]))).astype(jnp.float32)
        return w_p, b_p

    w1p, b1p = prep(w1, b1, k_pad, h_pad)
    w2p, b2p = prep(w2, b2, h_pad, h_pad)
    w3p, b3p = prep(w3, b3, h_pad, h_pad)
    w4p, b4p = prep(w4, b4, h_pad, h_pad)
    w5p, b5p = prep(w5, b5, h_pad, h_pad)
    w6p, b6p = prep(w6, b6, h_pad, o_pad)

    weights = [w1p, b1p, w2p, b2p, w3p, b3p, w4p, b4p, w5p, b5p, w6p, b6p]

    x_spec = pl.BlockSpec((tb, k_pad), lambda i: (i, 0))
    out_spec = pl.BlockSpec((tb, o_pad), lambda i: (i, 0))
    # Weights/biases: full-array blocks, constant index_map -> loaded once, VMEM-resident.
    w_specs = [pl.BlockSpec(w.shape, lambda i: (0, 0)) for w in weights]

    flops = 2 * B * (k_pad * h_pad + 4 * h_pad * h_pad + h_pad * o_pad)
    transcendentals = 5 * B * h_pad
    bytes_accessed = (x.size * x.dtype.itemsize
                      + sum(w.size * w.dtype.itemsize for w in weights)
                      + B * o_pad * 4)

    # TODO(synk): output kept f32 for module semantics; a bf16 output would halve the
    # writeback bytes if the consumer tolerates it.
    out_padded = pl.pallas_call(
        functools.partial(_mlp_kernel, n_split=n_split),
        out_shape=jax.ShapeDtypeStruct((B, o_pad), jnp.float32),
        grid=grid,
        in_specs=[x_spec] + w_specs,
        out_specs=out_spec,
        compiler_params=pltpu.CompilerParams(
            dimension_semantics=("parallel",),   # batch tiles shard across TCs on v7x
            vmem_limit_bytes=32 << 20,           # plenty: <8 MiB live even at TB=512
        ),
        cost_estimate=pl.CostEstimate(
            flops=flops,
            transcendentals=transcendentals,
            bytes_accessed=bytes_accessed,
        ),
    )(x, *weights)

    return out_padded[:, :output_dims]


def init_linear(key, in_features, out_features):
    """Deterministic init mirroring nn.Linear default (uniform +/- 1/sqrt(fan_in)).
    Weight is returned already transposed to (in_features, out_features)."""
    kw, kb = jax.random.split(key)
    bound = 1.0 / jnp.sqrt(jnp.float32(in_features))
    w = jax.random.uniform(kw, (in_features, out_features), jnp.float32,
                           minval=-bound, maxval=bound)
    b = jax.random.uniform(kb, (1, out_features), jnp.float32,
                           minval=-bound, maxval=bound)
    return w, b


def reference_forward_f32(x_nchw, params):
    """Pure-JAX f32 reference (module semantics)."""
    B = x_nchw.shape[0]
    h = x_nchw.reshape(B, -1)
    for i, (w, b) in enumerate(params):
        h = h @ w + b
        if i < len(params) - 1:
            h = jax.nn.sigmoid(h)
    return h


def reference_forward_bf16(x_nchw, params):
    """Reference mirroring the kernel's dtype choices (bf16 operands, f32 accumulate)."""
    B = x_nchw.shape[0]
    h = x_nchw.reshape(B, -1).astype(jnp.bfloat16)
    for i, (w, b) in enumerate(params):
        acc = jnp.dot(h, w.astype(jnp.bfloat16),
                      preferred_element_type=jnp.float32) + b.astype(jnp.float32)
        if i < len(params) - 1:
            h = jax.nn.sigmoid(acc).astype(jnp.bfloat16)
        else:
            h = acc
    return h


def _check(x, params, output_dims):
    out = jax.block_until_ready(mlp_forward(x, params))
    assert out.shape == (x.shape[0], output_dims), out.shape
    ref_mixed = reference_forward_bf16(x, params)
    assert jnp.allclose(out, ref_mixed, atol=2e-3, rtol=2e-3), \
        f"max abs err (mixed ref) {jnp.max(jnp.abs(out - ref_mixed))}"
    ref_f32 = reference_forward_f32(x, params)
    assert jnp.allclose(out, ref_f32, atol=1e-1, rtol=1e-1), \
        f"max abs err (f32 ref) {jnp.max(jnp.abs(out - ref_f32))}"
    return out


if __name__ == "__main__":
    # Shapes consistent with the module: NCHW input (2, 4, 16, 16)
    # -> input_dims = 4*16*16 = 1024, hidden_dims = 32, output_dims = 10.
    B, C, H, W = 2, 4, 16, 16
    input_dims = C * H * W
    hidden_dims = 32
    output_dims = 10

    key = jax.random.PRNGKey(0)
    kx, k1, k2, k3, k4, k5, k6, kx2 = jax.random.split(key, 8)

    params = [
        init_linear(k1, input_dims, hidden_dims),
        init_linear(k2, hidden_dims, hidden_dims),
        init_linear(k3, hidden_dims, hidden_dims),
        init_linear(k4, hidden_dims, hidden_dims),
        init_linear(k5, hidden_dims, hidden_dims),
        init_linear(k6, hidden_dims, output_dims),
    ]

    # Tiny-batch path (TB=8, single grid step, no split).
    x_small = jax.random.normal(kx, (B, C, H, W), jnp.float32)
    _check(x_small, params, output_dims)

    # Larger batch exercises the ragged last tile, multi-step grid and 2-way row split.
    x_big = jax.random.normal(kx2, (600, C, H, W), jnp.float32)
    _check(x_big, params, output_dims)

    print("KERNEL_OK")
</pallas_src>

<mosaic_0001>
module attributes {stable_mosaic.version = 11 : i64} {
  func.func @_mlp_kernel(%arg0: i32, %arg1: memref<8x1024xf32, #tpu.memory_space<vmem>>, %arg2: memref<1024x128xbf16, #tpu.memory_space<vmem>>, %arg3: memref<1x128xf32, #tpu.memory_space<vmem>>, %arg4: memref<128x128xbf16, #tpu.memory_space<vmem>>, %arg5: memref<1x128xf32, #tpu.memory_space<vmem>>, %arg6: memref<128x128xbf16, #tpu.memory_space<vmem>>, %arg7: memref<1x128xf32, #tpu.memory_space<vmem>>, %arg8: memref<128x128xbf16, #tpu.memory_space<vmem>>, %arg9: memref<1x128xf32, #tpu.memory_space<vmem>>, %arg10: memref<128x128xbf16, #tpu.memory_space<vmem>>, %arg11: memref<1x128xf32, #tpu.memory_space<vmem>>, %arg12: memref<128x128xbf16, #tpu.memory_space<vmem>>, %arg13: memref<1x128xf32, #tpu.memory_space<vmem>>, %arg14: memref<8x128xf32, #tpu.memory_space<vmem>>) attributes {dimension_semantics = [#tpu.dimension_semantics<parallel>], iteration_bounds = array<i64: 1>, scalar_prefetch = 0 : i64, scratch_operands = 0 : i64, tpu.core_type = #tpu.core_type<tc>, window_params = [{transform_indices = @transform_0, window_bounds = array<i64: 8, 1024>}, {pipeline_mode = #tpu.pipeline_mode<synchronous>, transform_indices = @transform_1, window_bounds = array<i64: 1024, 128>}, {pipeline_mode = #tpu.pipeline_mode<synchronous>, transform_indices = @transform_2, window_bounds = array<i64: 1, 128>}, {pipeline_mode = #tpu.pipeline_mode<synchronous>, transform_indices = @transform_3, window_bounds = array<i64: 128, 128>}, {pipeline_mode = #tpu.pipeline_mode<synchronous>, transform_indices = @transform_4, window_bounds = array<i64: 1, 128>}, {pipeline_mode = #tpu.pipeline_mode<synchronous>, transform_indices = @transform_5, window_bounds = array<i64: 128, 128>}, {pipeline_mode = #tpu.pipeline_mode<synchronous>, transform_indices = @transform_6, window_bounds = array<i64: 1, 128>}, {pipeline_mode = #tpu.pipeline_mode<synchronous>, transform_indices = @transform_7, window_bounds = array<i64: 128, 128>}, {pipeline_mode = #tpu.pipeline_mode<synchronous>, transform_indices = @transform_8, window_bounds = array<i64: 1, 128>}, {pipeline_mode = #tpu.pipeline_mode<synchronous>, transform_indices = @transform_9, window_bounds = array<i64: 128, 128>}, {pipeline_mode = #tpu.pipeline_mode<synchronous>, transform_indices = @transform_10, window_bounds = array<i64: 1, 128>}, {pipeline_mode = #tpu.pipeline_mode<synchronous>, transform_indices = @transform_11, window_bounds = array<i64: 128, 128>}, {pipeline_mode = #tpu.pipeline_mode<synchronous>, transform_indices = @transform_12, window_bounds = array<i64: 1, 128>}, {transform_indices = @transform_13, window_bounds = array<i64: 8, 128>}]} {
    %c0 = arith.constant 0 : index
    %c0_0 = arith.constant 0 : index
    %0 = vector.load %arg1[%c0, %c0_0] : memref<8x1024xf32, #tpu.memory_space<vmem>>, vector<8x1024xf32>
    %1 = arith.truncf %0 : vector<8x1024xf32> to vector<8x1024xbf16>
    %c0_1 = arith.constant 0 : index
    %c0_2 = arith.constant 0 : index
    %2 = vector.load %arg2[%c0_1, %c0_2] : memref<1024x128xbf16, #tpu.memory_space<vmem>>, vector<1024x128xbf16>
    %c0_3 = arith.constant 0 : index
    %c0_4 = arith.constant 0 : index
    %3 = vector.load %arg3[%c0_3, %c0_4] : memref<1x128xf32, #tpu.memory_space<vmem>>, vector<1x128xf32>
    %cst = arith.constant dense<0.000000e+00> : vector<8x128xf32>
    %4 = tpu.matmul %1, %2, %cst {dimension_numbers = #tpu.dot_dimension_numbers<[1], [0], [0], [1], [0, 0, 1, 1], [], []>} : vector<8x1024xbf16>, vector<1024x128xbf16>, vector<8x128xf32> -> vector<8x128xf32>
    %5 = vector.broadcast %3 : vector<1x128xf32> to vector<8x128xf32>
    %6 = arith.addf %4, %5 : vector<8x128xf32>
    %cst_5 = arith.constant 5.000000e-01 : f32
    %7 = vector.broadcast %cst_5 : f32 to vector<8x128xf32>
    %8 = arith.mulf %7, %6 : vector<8x128xf32>
    %9 = math.tanh %8 : vector<8x128xf32>
    %cst_6 = arith.constant 1.000000e+00 : f32
    %10 = vector.broadcast %cst_6 : f32 to vector<8x128xf32>
    %11 = arith.addf %9, %10 : vector<8x128xf32>
    %cst_7 = arith.constant 5.000000e-01 : f32
    %12 = vector.broadcast %cst_7 : f32 to vector<8x128xf32>
    %13 = arith.mulf %12, %11 : vector<8x128xf32>
    %14 = arith.truncf %13 : vector<8x128xf32> to vector<8x128xbf16>
    %c0_8 = arith.constant 0 : index
    %c0_9 = arith.constant 0 : index
    %15 = vector.load %arg4[%c0_8, %c0_9] : memref<128x128xbf16, #tpu.memory_space<vmem>>, vector<128x128xbf16>
    %c0_10 = arith.constant 0 : index
    %c0_11 = arith.constant 0 : index
    %16 = vector.load %arg5[%c0_10, %c0_11] : memref<1x128xf32, #tpu.memory_space<vmem>>, vector<1x128xf32>
    %cst_12 = arith.constant dense<0.000000e+00> : vector<8x128xf32>
    %17 = tpu.matmul %14, %15, %cst_12 {dimension_numbers = #tpu.dot_dimension_numbers<[1], [0], [0], [1], [0, 0, 1, 1], [], []>} : vector<8x128xbf16>, vector<128x128xbf16>, vector<8x128xf32> -> vector<8x128xf32>
    %18 = vector.broadcast %16 : vector<1x128xf32> to vector<8x128xf32>
    %19 = arith.addf %17, %18 : vector<8x128xf32>
    %cst_13 = arith.constant 5.000000e-01 : f32
    %20 = vector.broadcast %cst_13 : f32 to vector<8x128xf32>
    %21 = arith.mulf %20, %19 : vector<8x128xf32>
    %22 = math.tanh %21 : vector<8x128xf32>
    %cst_14 = arith.constant 1.000000e+00 : f32
    %23 = vector.broadcast %cst_14 : f32 to vector<8x128xf32>
    %24 = arith.addf %22, %23 : vector<8x128xf32>
    %cst_15 = arith.constant 5.000000e-01 : f32
    %25 = vector.broadcast %cst_15 : f32 to vector<8x128xf32>
    %26 = arith.mulf %25, %24 : vector<8x128xf32>
    %27 = arith.truncf %26 : vector<8x128xf32> to vector<8x128xbf16>
    %c0_16 = arith.constant 0 : index
    %c0_17 = arith.constant 0 : index
    %28 = vector.load %arg6[%c0_16, %c0_17] : memref<128x128xbf16, #tpu.memory_space<vmem>>, vector<128x128xbf16>
    %c0_18 = arith.constant 0 : index
    %c0_19 = arith.constant 0 : index
    %29 = vector.load %arg7[%c0_18, %c0_19] : memref<1x128xf32, #tpu.memory_space<vmem>>, vector<1x128xf32>
    %cst_20 = arith.constant dense<0.000000e+00> : vector<8x128xf32>
    %30 = tpu.matmul %27, %28, %cst_20 {dimension_numbers = #tpu.dot_dimension_numbers<[1], [0], [0], [1], [0, 0, 1, 1], [], []>} : vector<8x128xbf16>, vector<128x128xbf16>, vector<8x128xf32> -> vector<8x128xf32>
    %31 = vector.broadcast %29 : vector<1x128xf32> to vector<8x128xf32>
    %32 = arith.addf %30, %31 : vector<8x128xf32>
    %cst_21 = arith.constant 5.000000e-01 : f32
    %33 = vector.broadcast %cst_21 : f32 to vector<8x128xf32>
    %34 = arith.mulf %33, %32 : vector<8x128xf32>
    %35 = math.tanh %34 : vector<8x128xf32>
    %cst_22 = arith.constant 1.000000e+00 : f32
    %36 = vector.broadcast %cst_22 : f32 to vector<8x128xf32>
    %37 = arith.addf %35, %36 : vector<8x128xf32>
    %cst_23 = arith.constant 5.000000e-01 : f32
    %38 = vector.broadcast %cst_23 : f32 to vector<8x128xf32>
    %39 = arith.mulf %38, %37 : vector<8x128xf32>
    %40 = arith.truncf %39 : vector<8x128xf32> to vector<8x128xbf16>
    %c0_24 = arith.constant 0 : index
    %c0_25 = arith.constant 0 : index
    %41 = vector.load %arg8[%c0_24, %c0_25] : memref<128x128xbf16, #tpu.memory_space<vmem>>, vector<128x128xbf16>
    %c0_26 = arith.constant 0 : index
    %c0_27 = arith.constant 0 : index
    %42 = vector.load %arg9[%c0_26, %c0_27] : memref<1x128xf32, #tpu.memory_space<vmem>>, vector<1x128xf32>
    %cst_28 = arith.constant dense<0.000000e+00> : vector<8x128xf32>
    %43 = tpu.matmul %40, %41, %cst_28 {dimension_numbers = #tpu.dot_dimension_numbers<[1], [0], [0], [1], [0, 0, 1, 1], [], []>} : vector<8x128xbf16>, vector<128x128xbf16>, vector<8x128xf32> -> vector<8x128xf32>
    %44 = vector.broadcast %42 : vector<1x128xf32> to vector<8x128xf32>
    %45 = arith.addf %43, %44 : vector<8x128xf32>
    %cst_29 = arith.constant 5.000000e-01 : f32
    %46 = vector.broadcast %cst_29 : f32 to vector<8x128xf32>
    %47 = arith.mulf %46, %45 : vector<8x128xf32>
    %48 = math.tanh %47 : vector<8x128xf32>
    %cst_30 = arith.constant 1.000000e+00 : f32
    %49 = vector.broadcast %cst_30 : f32 to vector<8x128xf32>
    %50 = arith.addf %48, %49 : vector<8x128xf32>
    %cst_31 = arith.constant 5.000000e-01 : f32
    %51 = vector.broadcast %cst_31 : f32 to vector<8x128xf32>
    %52 = arith.mulf %51, %50 : vector<8x128xf32>
    %53 = arith.truncf %52 : vector<8x128xf32> to vector<8x128xbf16>
    %c0_32 = arith.constant 0 : index
    %c0_33 = arith.constant 0 : index
    %54 = vector.load %arg10[%c0_32, %c0_33] : memref<128x128xbf16, #tpu.memory_space<vmem>>, vector<128x128xbf16>
    %c0_34 = arith.constant 0 : index
    %c0_35 = arith.constant 0 : index
    %55 = vector.load %arg11[%c0_34, %c0_35] : memref<1x128xf32, #tpu.memory_space<vmem>>, vector<1x128xf32>
    %cst_36 = arith.constant dense<0.000000e+00> : vector<8x128xf32>
    %56 = tpu.matmul %53, %54, %cst_36 {dimension_numbers = #tpu.dot_dimension_numbers<[1], [0], [0], [1], [0, 0, 1, 1], [], []>} : vector<8x128xbf16>, vector<128x128xbf16>, vector<8x128xf32> -> vector<8x128xf32>
    %57 = vector.broadcast %55 : vector<1x128xf32> to vector<8x128xf32>
    %58 = arith.addf %56, %57 : vector<8x128xf32>
    %cst_37 = arith.constant 5.000000e-01 : f32
    %59 = vector.broadcast %cst_37 : f32 to vector<8x128xf32>
    %60 = arith.mulf %59, %58 : vector<8x128xf32>
    %61 = math.tanh %60 : vector<8x128xf32>
    %cst_38 = arith.constant 1.000000e+00 : f32
    %62 = vector.broadcast %cst_38 : f32 to vector<8x128xf32>
    %63 = arith.addf %61, %62 : vector<8x128xf32>
    %cst_39 = arith.constant 5.000000e-01 : f32
    %64 = vector.broadcast %cst_39 : f32 to vector<8x128xf32>
    %65 = arith.mulf %64, %63 : vector<8x128xf32>
    %66 = arith.truncf %65 : vector<8x128xf32> to vector<8x128xbf16>
    %c0_40 = arith.constant 0 : index
    %c0_41 = arith.constant 0 : index
    %67 = vector.load %arg12[%c0_40, %c0_41] : memref<128x128xbf16, #tpu.memory_space<vmem>>, vector<128x128xbf16>
    %c0_42 = arith.constant 0 : index
    %c0_43 = arith.constant 0 : index
    %68 = vector.load %arg13[%c0_42, %c0_43] : memref<1x128xf32, #tpu.memory_space<vmem>>, vector<1x128xf32>
    %cst_44 = arith.constant dense<0.000000e+00> : vector<8x128xf32>
    %69 = tpu.matmul %66, %67, %cst_44 {dimension_numbers = #tpu.dot_dimension_numbers<[1], [0], [0], [1], [0, 0, 1, 1], [], []>} : vector<8x128xbf16>, vector<128x128xbf16>, vector<8x128xf32> -> vector<8x128xf32>
    %70 = vector.broadcast %68 : vector<1x128xf32> to vector<8x128xf32>
    %71 = arith.addf %69, %70 : vector<8x128xf32>
    %c0_45 = arith.constant 0 : index
    %c0_46 = arith.constant 0 : index
    %72 = vector.load %arg14[%c0_45, %c0_46] : memref<8x128xf32, #tpu.memory_space<vmem>>, vector<8x128xf32>
    tpu.vector_store %arg14[%c0_45, %c0_46], %71 {strides = array<i32>} : memref<8x128xf32, #tpu.memory_space<vmem>>, vector<8x128xf32>,
    return
  }
  func.func @transform_0(%arg0: i32) -> (i32, i32) {
    %c0_i32 = arith.constant 0 : i32
    %c0_i32_0 = arith.constant 0 : i32
    return %arg0, %c0_i32 : i32, i32
  }
  func.func @transform_1(%arg0: i32) -> (i32, i32) {
    %c0_i32 = arith.constant 0 : i32
    %c0_i32_0 = arith.constant 0 : i32
    %c0_i32_1 = arith.constant 0 : i32
    return %c0_i32, %c0_i32_0 : i32, i32
  }
  func.func @transform_2(%arg0: i32) -> (i32, i32) {
    %c0_i32 = arith.constant 0 : i32
    %c0_i32_0 = arith.constant 0 : i32
    %c0_i32_1 = arith.constant 0 : i32
    return %c0_i32, %c0_i32_0 : i32, i32
  }
  func.func @transform_3(%arg0: i32) -> (i32, i32) {
    %c0_i32 = arith.constant 0 : i32
    %c0_i32_0 = arith.constant 0 : i32
    %c0_i32_1 = arith.constant 0 : i32
    return %c0_i32, %c0_i32_0 : i32, i32
  }
  func.func @transform_4(%arg0: i32) -> (i32, i32) {
    %c0_i32 = arith.constant 0 : i32
    %c0_i32_0 = arith.constant 0 : i32
    %c0_i32_1 = arith.constant 0 : i32
    return %c0_i32, %c0_i32_0 : i32, i32
  }
  func.func @transform_5(%arg0: i32) -> (i32, i32) {
    %c0_i32 = arith.constant 0 : i32
    %c0_i32_0 = arith.constant 0 : i32
    %c0_i32_1 = arith.constant 0 : i32
    return %c0_i32, %c0_i32_0 : i32, i32
  }
  func.func @transform_6(%arg0: i32) -> (i32, i32) {
    %c0_i32 = arith.constant 0 : i32
    %c0_i32_0 = arith.constant 0 : i32
    %c0_i32_1 = arith.constant 0 : i32
    return %c0_i32, %c0_i32_0 : i32, i32
  }
  func.func @transform_7(%arg0: i32) -> (i32, i32) {
    %c0_i32 = arith.constant 0 : i32
    %c0_i32_0 = arith.constant 0 : i32
    %c0_i32_1 = arith.constant 0 : i32
    return %c0_i32, %c0_i32_0 : i32, i32
  }
  func.func @transform_8(%arg0: i32) -> (i32, i32) {
    %c0_i32 = arith.constant 0 : i32
    %c0_i32_0 = arith.constant 0 : i32
    %c0_i32_1 = arith.constant 0 : i32
    return %c0_i32, %c0_i32_0 : i32, i32
  }
  func.func @transform_9(%arg0: i32) -> (i32, i32) {
    %c0_i32 = arith.constant 0 : i32
    %c0_i32_0 = arith.constant 0 : i32
    %c0_i32_1 = arith.constant 0 : i32
    return %c0_i32, %c0_i32_0 : i32, i32
  }
  func.func @transform_10(%arg0: i32) -> (i32, i32) {
    %c0_i32 = arith.constant 0 : i32
    %c0_i32_0 = arith.constant 0 : i32
    %c0_i32_1 = arith.constant 0 : i32
    return %c0_i32, %c0_i32_0 : i32, i32
  }
  func.func @transform_11(%arg0: i32) -> (i32, i32) {
    %c0_i32 = arith.constant 0 : i32
    %c0_i32_0 = arith.constant 0 : i32
    %c0_i32_1 = arith.constant 0 : i32
    return %c0_i32, %c0_i32_0 : i32, i32
  }
  func.func @transform_12(%arg0: i32) -> (i32, i32) {
    %c0_i32 = arith.constant 0 : i32
    %c0_i32_0 = arith.constant 0 : i32
    %c0_i32_1 = arith.constant 0 : i32
    return %c0_i32, %c0_i32_0 : i32, i32
  }
  func.func @transform_13(%arg0: i32) -> (i32, i32) {
    %c0_i32 = arith.constant 0 : i32
    %c0_i32_0 = arith.constant 0 : i32
    return %arg0, %c0_i32 : i32, i32
  }
}

</mosaic_0001>

<llo_original>
// kernel: mlp_forward.1
$region0: #{mlp_forward.1}
  #allocation0 [shape = 'u32[]', space=smem, size = 0x4, offset = 0x4, fixed_abs, tag = 'smem constant byte address 0x4 - core index']
  #allocation1 [shape = 'u32[144,128]{1,0:T(1,128)}', space=vmem, size = 0x12000, scoped, tag = 'internal scratch']
  %s0 = inlined_call_operand.vmem [shape: f32[2,1024], index: 0, kind: input, shape index: {}]
  %s1 = inlined_call_operand.vmem [shape: bf16[1024,128], index: 1, kind: input, shape index: {}]
  %s2 = inlined_call_operand.vmem [shape: f32[1,128], index: 2, kind: input, shape index: {}]
  %s3 = inlined_call_operand.vmem [shape: bf16[128,128], index: 3, kind: input, shape index: {}]
  %s4 = inlined_call_operand.vmem [shape: f32[1,128], index: 4, kind: input, shape index: {}]
  %s5 = inlined_call_operand.vmem [shape: bf16[128,128], index: 5, kind: input, shape index: {}]
  %s6 = inlined_call_operand.vmem [shape: f32[1,128], index: 6, kind: input, shape index: {}]
  %s7 = inlined_call_operand.vmem [shape: bf16[128,128], index: 7, kind: input, shape index: {}]
  %s8 = inlined_call_operand.vmem [shape: f32[1,128], index: 8, kind: input, shape index: {}]
  %s9 = inlined_call_operand.vmem [shape: bf16[128,128], index: 9, kind: input, shape index: {}]
  %s10 = inlined_call_operand.vmem [shape: f32[1,128], index: 10, kind: input, shape index: {}]
  %s11 = inlined_call_operand.vmem [shape: bf16[128,128], index: 11, kind: input, shape index: {}]
  %s12 = inlined_call_operand.vmem [shape: f32[1,128], index: 12, kind: input, shape index: {}]
  %s13 = inlined_call_operand.hbm [shape: f32[2,128], index: 13, kind: output, shape index: {}]
  %s14 = sld [smem:[#allocation0]]
  $region62: #{mlp_forward.1} parent=0
    _
  %s16 = ssub.s32 1, %s14
  %s17 = scalar_select 0, %s16, %s14
  $region1: #{mlp_forward.1} parent=0
    #allocation2 [shape = 'u8[4096]{0}', space=vmem, size = 0x1000, scoped, tag = 'output window, operand 0, single buffered']
    #allocation3 [shape = 's32[1]{0}', space=sflag, size = 0x4, scoped, tag = 'scoped memory for mlp_forward.1']
    %18 = vsyncpa [#allocation3], 0
    // Predicated region
    $region2: #{mlp_forward.1} parent=1 // pred_check
      _
    $region3: #{mlp_forward.1} parent=1 // pred_check_branch
      %20 = sbr.rel (0) target = $region5
    $region4: #{mlp_forward.1} parent=1 // pred_region
      _
    $region5: #{mlp_forward.1} parent=1 // pred_fallthru
      _
    // Predicated region
    $region6: #{mlp_forward.1} parent=1 // pred_check
      _
    $region7: #{mlp_forward.1} parent=1 // pred_check_branch
      %22 = sbr.rel (0) target = $region9
    $region8: #{mlp_forward.1} parent=1 // pred_region
      _
    $region9: #{mlp_forward.1} parent=1 // pred_fallthru
      _
    // Predicated region
    $region10: #{mlp_forward.1} parent=1 // pred_check
      _
    $region11: #{mlp_forward.1} parent=1 // pred_check_branch
      %24 = sbr.rel (0) target = $region13
    $region12: #{mlp_forward.1} parent=1 // pred_region
      _
    $region13: #{mlp_forward.1} parent=1 // pred_fallthru
      _
    // Predicated region
    $region14: #{mlp_forward.1} parent=1 // pred_check
      _
    $region15: #{mlp_forward.1} parent=1 // pred_check_branch
      %26 = sbr.rel (0) target = $region17
    $region16: #{mlp_forward.1} parent=1 // pred_region
      _
    $region17: #{mlp_forward.1} parent=1 // pred_fallthru
      _
    // Predicated region
    $region18: #{mlp_forward.1} parent=1 // pred_check
      _
    $region19: #{mlp_forward.1} parent=1 // pred_check_branch
      %28 = sbr.rel (0) target = $region21
    $region20: #{mlp_forward.1} parent=1 // pred_region
      _
    $region21: #{mlp_forward.1} parent=1 // pred_fallthru
      _
    // Predicated region
    $region22: #{mlp_forward.1} parent=1 // pred_check
      _
    $region23: #{mlp_forward.1} parent=1 // pred_check_branch
      %30 = sbr.rel (0) target = $region25
    $region24: #{mlp_forward.1} parent=1 // pred_region
      _
    $region25: #{mlp_forward.1} parent=1 // pred_fallthru
      _
    // Predicated region
    $region26: #{mlp_forward.1} parent=1 // pred_check
      _
    $region27: #{mlp_forward.1} parent=1 // pred_check_branch
      %32 = sbr.rel (0) target = $region29
    $region28: #{mlp_forward.1} parent=1 // pred_region
      _
    $region29: #{mlp_forward.1} parent=1 // pred_fallthru
      _
    // Predicated region
    $region30: #{mlp_forward.1} parent=1 // pred_check
      _
    $region31: #{mlp_forward.1} parent=1 // pred_check_branch
      %34 = sbr.rel (0) target = $region33
    $region32: #{mlp_forward.1} parent=1 // pred_region
      _
    $region33: #{mlp_forward.1} parent=1 // pred_fallthru
      _
    // Predicated region
    $region34: #{mlp_forward.1} parent=1 // pred_check
      _
    $region35: #{mlp_forward.1} parent=1 // pred_check_branch
      %36 = sbr.rel (0) target = $region37
    $region36: #{mlp_forward.1} parent=1 // pred_region
      _
    $region37: #{mlp_forward.1} parent=1 // pred_fallthru
      _
    // Predicated region
    $region38: #{mlp_forward.1} parent=1 // pred_check
      _
    $region39: #{mlp_forward.1} parent=1 // pred_check_branch
      %38 = sbr.rel (0) target = $region41
    $region40: #{mlp_forward.1} parent=1 // pred_region
      _
    $region41: #{mlp_forward.1} parent=1 // pred_fallthru
      _
    // Predicated region
    $region42: #{mlp_forward.1} parent=1 // pred_check
      _
    $region43: #{mlp_forward.1} parent=1 // pred_check_branch
      %40 = sbr.rel (0) target = $region45
    $region44: #{mlp_forward.1} parent=1 // pred_region
      _
    $region45: #{mlp_forward.1} parent=1 // pred_fallthru
      _
    // Predicated region
    $region46: #{mlp_forward.1} parent=1 // pred_check
      _
    $region47: #{mlp_forward.1} parent=1 // pred_check_branch
      %42 = sbr.rel (0) target = $region49
    $region48: #{mlp_forward.1} parent=1 // pred_region
      _
    $region49: #{mlp_forward.1} parent=1 // pred_fallthru
      _
    // Predicated region
    $region50: #{mlp_forward.1} parent=1 // pred_check
      _
    $region51: #{mlp_forward.1} parent=1 // pred_check_branch
      %44 = sbr.rel (0) target = $region53
    $region52: #{mlp_forward.1} parent=1 // pred_region
      _
    $region53: #{mlp_forward.1} parent=1 // pred_fallthru
      _
    %v46 = vld [vmem:[%s0] sm:$0xff]
    %v47 = vld [vmem:[%s0 + $0x8] sm:$0xff]
    %v48 = vld [vmem:[%s0 + $0x10] sm:$0xff]
    %v49 = vld [vmem:[%s0 + $0x18] sm:$0xff]
    %v50 = vld [vmem:[%s0 + $0x20] sm:$0xff]
    %v51 = vld [vmem:[%s0 + $0x28] sm:$0xff]
    %v52 = vld [vmem:[%s0 + $0x30] sm:$0xff]
    %v53 = vld [vmem:[%s0 + $0x38] sm:$0xff]
    %v62 = vcombine.low %v46, %v48
    %v63 = vcombine.high %v46, %v48
    %v64 = vcombine.low %v50, %v52
    %v65 = vcombine.high %v50, %v52
    %v67 = vunpack.c.l.s4 1983009808
    %v68 = vunpack.c.0.s8 %v67
    %v69 = vlaneseq
    %v70 = vshrl.u32 %v69, 7
    %v71 = vsub.s32 %v68, %v70
    %v72 = vrot.slane %v62, %v71
    %v74 = vunpack.c.l.s4 1983009808
    %v75 = vunpack.c.0.s8 %v74
    %v76 = vlaneseq
    %v77 = vshrl.u32 %v76, 7
    %v78 = vsub.s32 %v75, %v77
    %v79 = vrot.slane %v63, %v78
    %v81 = vunpack.c.l.s4 1983009808
    %v82 = vunpack.c.0.s8 %v81
    %v83 = vlaneseq
    %v84 = vshrl.u32 %v83, 7
    %v85 = vsub.s32 %v82, %v84
    %v86 = vrot.slane %v64, %v85
    %v88 = vunpack.c.l.s4 1983009808
    %v89 = vunpack.c.0.s8 %v88
    %v90 = vlaneseq
    %v91 = vshrl.u32 %v90, 7
    %v92 = vsub.s32 %v89, %v91
    %v93 = vrot.slane %v65, %v92
    %v94 = vcombine.low %v72, %v86
    %v95 = vcombine.high %v72, %v86
    %v96 = vcombine.low %v79, %v93
    %v97 = vcombine.high %v79, %v93
    %v98 = vcombine.low %v47, %v49
    %v99 = vcombine.high %v47, %v49
    %v100 = vcombine.low %v51, %v53
    %v101 = vcombine.high %v51, %v53
    %v103 = vunpack.c.l.s4 1983009808
    %v104 = vunpack.c.0.s8 %v103
    %v105 = vlaneseq
    %v106 = vshrl.u32 %v105, 7
    %v107 = vsub.s32 %v104, %v106
    %v108 = vrot.slane %v98, %v107
    %v110 = vunpack.c.l.s4 1983009808
    %v111 = vunpack.c.0.s8 %v110
    %v112 = vlaneseq
    %v113 = vshrl.u32 %v112, 7
    %v114 = vsub.s32 %v111, %v113
    %v115 = vrot.slane %v99, %v114
    %v117 = vunpack.c.l.s4 1983009808
    %v118 = vunpack.c.0.s8 %v117
    %v119 = vlaneseq
    %v120 = vshrl.u32 %v119, 7
    %v121 = vsub.s32 %v118, %v120
    %v122 = vrot.slane %v100, %v121
    %v124 = vunpack.c.l.s4 1983009808
    %v125 = vunpack.c.0.s8 %v124
    %v126 = vlaneseq
    %v127 = vshrl.u32 %v126, 7
    %v128 = vsub.s32 %v125, %v127
    %v129 = vrot.slane %v101, %v128
    %v130 = vcombine.low %v108, %v122
    %v131 = vcombine.high %v108, %v122
    %v132 = vcombine.low %v115, %v129
    %v133 = vcombine.high %v115, %v129
    %v142 = vpack.c.bf16 %v94, %v94
    %v143 = vpack.c.bf16 %v95, %v95
    %v144 = vpack.c.bf16 %v96, %v96
    %v145 = vpack.c.bf16 %v97, %v97
    %v146 = vpack.c.bf16 %v130, %v130
    %v147 = vpack.c.bf16 %v131, %v131
    %v148 = vpack.c.bf16 %v132, %v132
    %v149 = vpack.c.bf16 %v133, %v133
    %v150 = vld [vmem:[%s1] sm:$0xf]
    %v151 = vld [vmem:[%s1 + $0x4] sm:$0xf]
    %v152 = vld [vmem:[%s1 + $0x8] sm:$0xf]
    %v153 = vld [vmem:[%s1 + $0xc] sm:$0xf]
    %v154 = vld [vmem:[%s1 + $0x10] sm:$0xf]
    %v155 = vld [vmem:[%s1 + $0x14] sm:$0xf]
    %v156 = vld [vmem:[%s1 + $0x18] sm:$0xf]
    %v157 = vld [vmem:[%s1 + $0x1c] sm:$0xf]
    %v158 = vld [vmem:[%s1 + $0x20] sm:$0xf]
    %v159 = vld [vmem:[%s1 + $0x24] sm:$0xf]
    %v160 = vld [vmem:[%s1 + $0x28] sm:$0xf]
    %v161 = vld [vmem:[%s1 + $0x2c] sm:$0xf]
    %v162 = vld [vmem:[%s1 + $0x30] sm:$0xf]
    %v163 = vld [vmem:[%s1 + $0x34] sm:$0xf]
    %v164 = vld [vmem:[%s1 + $0x38] sm:$0xf]
    %v165 = vld [vmem:[%s1 + $0x3c] sm:$0xf]
    %v166 = vld [vmem:[%s1 + $0x40] sm:$0xf]
    %v167 = vld [vmem:[%s1 + $0x44] sm:$0xf]
    %v168 = vld [vmem:[%s1 + $0x48] sm:$0xf]
    %v169 = vld [vmem:[%s1 + $0x4c] sm:$0xf]
    %v170 = vld [vmem:[%s1 + $0x50] sm:$0xf]
    %v171 = vld [vmem:[%s1 + $0x54] sm:$0xf]
    %v172 = vld [vmem:[%s1 + $0x58] sm:$0xf]
    %v173 = vld [vmem:[%s1 + $0x5c] sm:$0xf]
    %v174 = vld [vmem:[%s1 + $0x60] sm:$0xf]
    %v175 = vld [vmem:[%s1 + $0x64] sm:$0xf]
    %v176 = vld [vmem:[%s1 + $0x68] sm:$0xf]
    %v177 = vld [vmem:[%s1 + $0x6c] sm:$0xf]
    %v178 = vld [vmem:[%s1 + $0x70] sm:$0xf]
    %v179 = vld [vmem:[%s1 + $0x74] sm:$0xf]
    %v180 = vld [vmem:[%s1 + $0x78] sm:$0xf]
    %v181 = vld [vmem:[%s1 + $0x7c] sm:$0xf]
    %v182 = vld [vmem:[%s1 + $0x80] sm:$0xf]
    %v183 = vld [vmem:[%s1 + $0x84] sm:$0xf]
    %v184 = vld [vmem:[%s1 + $0x88] sm:$0xf]
    %v185 = vld [vmem:[%s1 + $0x8c] sm:$0xf]
    %v186 = vld [vmem:[%s1 + $0x90] sm:$0xf]
    %v187 = vld [vmem:[%s1 + $0x94] sm:$0xf]
    %v188 = vld [vmem:[%s1 + $0x98] sm:$0xf]
    %v189 = vld [vmem:[%s1 + $0x9c] sm:$0xf]
    %v190 = vld [vmem:[%s1 + $0xa0] sm:$0xf]
    %v191 = vld [vmem:[%s1 + $0xa4] sm:$0xf]
    %v192 = vld [vmem:[%s1 + $0xa8] sm:$0xf]
    %v193 = vld [vmem:[%s1 + $0xac] sm:$0xf]
    %v194 = vld [vmem:[%s1 + $0xb0] sm:$0xf]
    %v195 = vld [vmem:[%s1 + $0xb4] sm:$0xf]
    %v196 = vld [vmem:[%s1 + $0xb8] sm:$0xf]
    %v197 = vld [vmem:[%s1 + $0xbc] sm:$0xf]
    %v198 = vld [vmem:[%s1 + $0xc0] sm:$0xf]
    %v199 = vld [vmem:[%s1 + $0xc4] sm:$0xf]
    %v200 = vld [vmem:[%s1 + $0xc8] sm:$0xf]
    %v201 = vld [vmem:[%s1 + $0xcc] sm:$0xf]
    %v202 = vld [vmem:[%s1 + $0xd0] sm:$0xf]
    %v203 = vld [vmem:[%s1 + $0xd4] sm:$0xf]
    %v204 = vld [vmem:[%s1 + $0xd8] sm:$0xf]
    %v205 = vld [vmem:[%s1 + $0xdc] sm:$0xf]
    %v206 = vld [vmem:[%s1 + $0xe0] sm:$0xf]
    %v207 = vld [vmem:[%s1 + $0xe4] sm:$0xf]
    %v208 = vld [vmem:[%s1 + $0xe8] sm:$0xf]
    %v209 = vld [vmem:[%s1 + $0xec] sm:$0xf]
    %v210 = vld [vmem:[%s1 + $0xf0] sm:$0xf]
    %v211 = vld [vmem:[%s1 + $0xf4] sm:$0xf]
    %v212 = vld [vmem:[%s1 + $0xf8] sm:$0xf]
    %v213 = vld [vmem:[%s1 + $0xfc] sm:$0xf]
    %v214 = vld [vmem:[%s1 + $0x100] sm:$0xf]
    %v215 = vld [vmem:[%s1 + $0x104] sm:$0xf]
    %v216 = vld [vmem:[%s1 + $0x108] sm:$0xf]
    %v217 = vld [vmem:[%s1 + $0x10c] sm:$0xf]
    %v218 = vld [vmem:[%s1 + $0x110] sm:$0xf]
    %v219 = vld [vmem:[%s1 + $0x114] sm:$0xf]
    %v220 = vld [vmem:[%s1 + $0x118] sm:$0xf]
    %v221 = vld [vmem:[%s1 + $0x11c] sm:$0xf]
    %v222 = vld [vmem:[%s1 + $0x120] sm:$0xf]
    %v223 = vld [vmem:[%s1 + $0x124] sm:$0xf]
    %v224 = vld [vmem:[%s1 + $0x128] sm:$0xf]
    %v225 = vld [vmem:[%s1 + $0x12c] sm:$0xf]
    %v226 = vld [vmem:[%s1 + $0x130] sm:$0xf]
    %v227 = vld [vmem:[%s1 + $0x134] sm:$0xf]
    %v228 = vld [vmem:[%s1 + $0x138] sm:$0xf]
    %v229 = vld [vmem:[%s1 + $0x13c] sm:$0xf]
    %v230 = vld [vmem:[%s1 + $0x140] sm:$0xf]
    %v231 = vld [vmem:[%s1 + $0x144] sm:$0xf]
    %v232 = vld [vmem:[%s1 + $0x148] sm:$0xf]
    %v233 = vld [vmem:[%s1 + $0x14c] sm:$0xf]
    %v234 = vld [vmem:[%s1 + $0x150] sm:$0xf]
    %v235 = vld [vmem:[%s1 + $0x154] sm:$0xf]
    %v236 = vld [vmem:[%s1 + $0x158] sm:$0xf]
    %v237 = vld [vmem:[%s1 + $0x15c] sm:$0xf]
    %v238 = vld [vmem:[%s1 + $0x160] sm:$0xf]
    %v239 = vld [vmem:[%s1 + $0x164] sm:$0xf]
    %v240 = vld [vmem:[%s1 + $0x168] sm:$0xf]
    %v241 = vld [vmem:[%s1 + $0x16c] sm:$0xf]
    %v242 = vld [vmem:[%s1 + $0x170] sm:$0xf]
    %v243 = vld [vmem:[%s1 + $0x174] sm:$0xf]
    %v244 = vld [vmem:[%s1 + $0x178] sm:$0xf]
    %v245 = vld [vmem:[%s1 + $0x17c] sm:$0xf]
    %v246 = vld [vmem:[%s1 + $0x180] sm:$0xf]
    %v247 = vld [vmem:[%s1 + $0x184] sm:$0xf]
    %v248 = vld [vmem:[%s1 + $0x188] sm:$0xf]
    %v249 = vld [vmem:[%s1 + $0x18c] sm:$0xf]
    %v250 = vld [vmem:[%s1 + $0x190] sm:$0xf]
    %v251 = vld [vmem:[%s1 + $0x194] sm:$0xf]
    %v252 = vld [vmem:[%s1 + $0x198] sm:$0xf]
    %v253 = vld [vmem:[%s1 + $0x19c] sm:$0xf]
    %v254 = vld [vmem:[%s1 + $0x1a0] sm:$0xf]
    %v255 = vld [vmem:[%s1 + $0x1a4] sm:$0xf]
    %v256 = vld [vmem:[%s1 + $0x1a8] sm:$0xf]
    %v257 = vld [vmem:[%s1 + $0x1ac] sm:$0xf]
    %v258 = vld [vmem:[%s1 + $0x1b0] sm:$0xf]
    %v259 = vld [vmem:[%s1 + $0x1b4] sm:$0xf]
    %v260 = vld [vmem:[%s1 + $0x1b8] sm:$0xf]
    %v261 = vld [vmem:[%s1 + $0x1bc] sm:$0xf]
    %v262 = vld [vmem:[%s1 + $0x1c0] sm:$0xf]
    %v263 = vld [vmem:[%s1 + $0x1c4] sm:$0xf]
    %v264 = vld [vmem:[%s1 + $0x1c8] sm:$0xf]
    %v265 = vld [vmem:[%s1 + $0x1cc] sm:$0xf]
    %v266 = vld [vmem:[%s1 + $0x1d0] sm:$0xf]
    %v267 = vld [vmem:[%s1 + $0x1d4] sm:$0xf]
    %v268 = vld [vmem:[%s1 + $0x1d8] sm:$0xf]
    %v269 = vld [vmem:[%s1 + $0x1dc] sm:$0xf]
    %v270 = vld [vmem:[%s1 + $0x1e0] sm:$0xf]
    %v271 = vld [vmem:[%s1 + $0x1e4] sm:$0xf]
    %v272 = vld [vmem:[%s1 + $0x1e8] sm:$0xf]
    %v273 = vld [vmem:[%s1 + $0x1ec] sm:$0xf]
    %v274 = vld [vmem:[%s1 + $0x1f0] sm:$0xf]
    %v275 = vld [vmem:[%s1 + $0x1f4] sm:$0xf]
    %v276 = vld [vmem:[%s1 + $0x1f8] sm:$0xf]
    %v277 = vld [vmem:[%s1 + $0x1fc] sm:$0xf]
    %v278 = vld [vmem:[%s2] sm:$0x1]
    %v280 = vlaneseq
    %v281 = vshrl.u32 %v280, 7
    %v282 = vsub.s32 0, %v281
    %v283 = vrot.slane %v278, %v282
    %v413 = vunpack.c.l.b16 %v150
    %v414 = vunpack.c.l.b16 %v151
    %v415 = vunpack.c.l.b16 %v152
    %v416 = vunpack.c.l.b16 %v153
    %v417 = vunpack.c.l.b16 %v154
    %v418 = vunpack.c.l.b16 %v155
    %v419 = vunpack.c.l.b16 %v156
    %v420 = vunpack.c.l.b16 %v157
    %v421 = vunpack.c.l.b16 %v158
    %v422 = vunpack.c.l.b16 %v159
    %v423 = vunpack.c.l.b16 %v160
    %v424 = vunpack.c.l.b16 %v161
    %v425 = vunpack.c.l.b16 %v162
    %v426 = vunpack.c.l.b16 %v163
    %v427 = vunpack.c.l.b16 %v164
    %v428 = vunpack.c.l.b16 %v165
    %v429 = vunpack.c.l.b16 %v166
    %v430 = vunpack.c.l.b16 %v167
    %v431 = vunpack.c.l.b16 %v168
    %v432 = vunpack.c.l.b16 %v169
    %v433 = vunpack.c.l.b16 %v170
    %v434 = vunpack.c.l.b16 %v171
    %v435 = vunpack.c.l.b16 %v172
    %v436 = vunpack.c.l.b16 %v173
    %v437 = vunpack.c.l.b16 %v174
    %v438 = vunpack.c.l.b16 %v175
    %v439 = vunpack.c.l.b16 %v176
    %v440 = vunpack.c.l.b16 %v177
    %v441 = vunpack.c.l.b16 %v178
    %v442 = vunpack.c.l.b16 %v179
    %v443 = vunpack.c.l.b16 %v180
    %v444 = vunpack.c.l.b16 %v181
    %v445 = vunpack.c.l.b16 %v182
    %v446 = vunpack.c.l.b16 %v183
    %v447 = vunpack.c.l.b16 %v184
    %v448 = vunpack.c.l.b16 %v185
    %v449 = vunpack.c.l.b16 %v186
    %v450 = vunpack.c.l.b16 %v187
    %v451 = vunpack.c.l.b16 %v188
    %v452 = vunpack.c.l.b16 %v189
    %v453 = vunpack.c.l.b16 %v190
    %v454 = vunpack.c.l.b16 %v191
    %v455 = vunpack.c.l.b16 %v192
    %v456 = vunpack.c.l.b16 %v193
    %v457 = vunpack.c.l.b16 %v194
    %v458 = vunpack.c.l.b16 %v195
    %v459 = vunpack.c.l.b16 %v196
    %v460 = vunpack.c.l.b16 %v197
    %v461 = vunpack.c.l.b16 %v198
    %v462 = vunpack.c.l.b16 %v199
    %v463 = vunpack.c.l.b16 %v200
    %v464 = vunpack.c.l.b16 %v201
    %v465 = vunpack.c.l.b16 %v202
    %v466 = vunpack.c.l.b16 %v203
    %v467 = vunpack.c.l.b16 %v204
    %v468 = vunpack.c.l.b16 %v205
    %v469 = vunpack.c.l.b16 %v206
    %v470 = vunpack.c.l.b16 %v207
    %v471 = vunpack.c.l.b16 %v208
    %v472 = vunpack.c.l.b16 %v209
    %v473 = vunpack.c.l.b16 %v210
    %v474 = vunpack.c.l.b16 %v211
    %v475 = vunpack.c.l.b16 %v212
    %v476 = vunpack.c.l.b16 %v213
    %v477 = vunpack.c.l.b16 %v214
    %v478 = vunpack.c.l.b16 %v215
    %v479 = vunpack.c.l.b16 %v216
    %v480 = vunpack.c.l.b16 %v217
    %v481 = vunpack.c.l.b16 %v218
    %v482 = vunpack.c.l.b16 %v219
    %v483 = vunpack.c.l.b16 %v220
    %v484 = vunpack.c.l.b16 %v221
    %v485 = vunpack.c.l.b16 %v222
    %v486 = vunpack.c.l.b16 %v223
    %v487 = vunpack.c.l.b16 %v224
    %v488 = vunpack.c.l.b16 %v225
    %v489 = vunpack.c.l.b16 %v226
    %v490 = vunpack.c.l.b16 %v227
    %v491 = vunpack.c.l.b16 %v228
    %v492 = vunpack.c.l.b16 %v229
    %v493 = vunpack.c.l.b16 %v230
    %v494 = vunpack.c.l.b16 %v231
    %v495 = vunpack.c.l.b16 %v232
    %v496 = vunpack.c.l.b16 %v233
    %v497 = vunpack.c.l.b16 %v234
    %v498 = vunpack.c.l.b16 %v235
    %v499 = vunpack.c.l.b16 %v236
    %v500 = vunpack.c.l.b16 %v237
    %v501 = vunpack.c.l.b16 %v238
    %v502 = vunpack.c.l.b16 %v239
    %v503 = vunpack.c.l.b16 %v240
    %v504 = vunpack.c.l.b16 %v241
    %v505 = vunpack.c.l.b16 %v242
    %v506 = vunpack.c.l.b16 %v243
    %v507 = vunpack.c.l.b16 %v244
    %v508 = vunpack.c.l.b16 %v245
    %v509 = vunpack.c.l.b16 %v246
    %v510 = vunpack.c.l.b16 %v247
    %v511 = vunpack.c.l.b16 %v248
    %v512 = vunpack.c.l.b16 %v249
    %v513 = vunpack.c.l.b16 %v250
    %v514 = vunpack.c.l.b16 %v251
    %v515 = vunpack.c.l.b16 %v252
    %v516 = vunpack.c.l.b16 %v253
    %v517 = vunpack.c.l.b16 %v254
    %v518 = vunpack.c.l.b16 %v255
    %v519 = vunpack.c.l.b16 %v256
    %v520 = vunpack.c.l.b16 %v257
    %v521 = vunpack.c.l.b16 %v258
    %v522 = vunpack.c.l.b16 %v259
    %v523 = vunpack.c.l.b16 %v260
    %v524 = vunpack.c.l.b16 %v261
    %v525 = vunpack.c.l.b16 %v262
    %v526 = vunpack.c.l.b16 %v263
    %v527 = vunpack.c.l.b16 %v264
    %v528 = vunpack.c.l.b16 %v265
    %v529 = vunpack.c.l.b16 %v266
    %v530 = vunpack.c.l.b16 %v267
    %v531 = vunpack.c.l.b16 %v268
    %v532 = vunpack.c.l.b16 %v269
    %v533 = vunpack.c.l.b16 %v270
    %v534 = vunpack.c.l.b16 %v271
    %v535 = vunpack.c.l.b16 %v272
    %v536 = vunpack.c.l.b16 %v273
    %v537 = vunpack.c.l.b16 %v274
    %v538 = vunpack.c.l.b16 %v275
    %v539 = vunpack.c.l.b16 %v276
    %v540 = vunpack.c.l.b16 %v277
    %v541 = vpack.c.b16 %v414, %v413
    %v542 = vpack.c.b16 %v416, %v415
    %v543 = vpack.c.b16 %v418, %v417
    %v544 = vpack.c.b16 %v420, %v419
    %v545 = vpack.c.b16 %v422, %v421
    %v546 = vpack.c.b16 %v424, %v423
    %v547 = vpack.c.b16 %v426, %v425
    %v548 = vpack.c.b16 %v428, %v427
    %v549 = vpack.c.b16 %v430, %v429
    %v550 = vpack.c.b16 %v432, %v431
    %v551 = vpack.c.b16 %v434, %v433
    %v552 = vpack.c.b16 %v436, %v435
    %v553 = vpack.c.b16 %v438, %v437
    %v554 = vpack.c.b16 %v440, %v439
    %v555 = vpack.c.b16 %v442, %v441
    %v556 = vpack.c.b16 %v444, %v443
    %v557 = vpack.c.b16 %v446, %v445
    %v558 = vpack.c.b16 %v448, %v447
    %v559 = vpack.c.b16 %v450, %v449
    %v560 = vpack.c.b16 %v452, %v451
    %v561 = vpack.c.b16 %v454, %v453
    %v562 = vpack.c.b16 %v456, %v455
    %v563 = vpack.c.b16 %v458, %v457
    %v564 = vpack.c.b16 %v460, %v459
    %v565 = vpack.c.b16 %v462, %v461
    %v566 = vpack.c.b16 %v464, %v463
    %v567 = vpack.c.b16 %v466, %v465
    %v568 = vpack.c.b16 %v468, %v467
    %v569 = vpack.c.b16 %v470, %v469
    %v570 = vpack.c.b16 %v472, %v471
    %v571 = vpack.c.b16 %v474, %v473
    %v572 = vpack.c.b16 %v476, %v475
    %v573 = vpack.c.b16 %v478, %v477
    %v574 = vpack.c.b16 %v480, %v479
    %v575 = vpack.c.b16 %v482, %v481
    %v576 = vpack.c.b16 %v484, %v483
    %v577 = vpack.c.b16 %v486, %v485
    %v578 = vpack.c.b16 %v488, %v487
    %v579 = vpack.c.b16 %v490, %v489
    %v580 = vpack.c.b16 %v492, %v491
    %v581 = vpack.c.b16 %v494, %v493
    %v582 = vpack.c.b16 %v496, %v495
    %v583 = vpack.c.b16 %v498, %v497
    %v584 = vpack.c.b16 %v500, %v499
    %v585 = vpack.c.b16 %v502, %v501
    %v586 = vpack.c.b16 %v504, %v503
    %v587 = vpack.c.b16 %v506, %v505
    %v588 = vpack.c.b16 %v508, %v507
    %v589 = vpack.c.b16 %v510, %v509
    %v590 = vpack.c.b16 %v512, %v511
    %v591 = vpack.c.b16 %v514, %v513
    %v592 = vpack.c.b16 %v516, %v515
    %v593 = vpack.c.b16 %v518, %v517
    %v594 = vpack.c.b16 %v520, %v519
    %v595 = vpack.c.b16 %v522, %v521
    %v596 = vpack.c.b16 %v524, %v523
    %v597 = vpack.c.b16 %v526, %v525
    %v598 = vpack.c.b16 %v528, %v527
    %v599 = vpack.c.b16 %v530, %v529
    %v600 = vpack.c.b16 %v532, %v531
    %v601 = vpack.c.b16 %v534, %v533
    %v602 = vpack.c.b16 %v536, %v535
    %v603 = vpack.c.b16 %v538, %v537
    %v604 = vpack.c.b16 %v540, %v539
    %669 = vmatprep.subr.bf16.mxu0 0
    %670 = vmatpush1.bf16.msra.mxu0 %v548
    %671 = vmatprep.subr.bf16.mxu0 0
    %672 = vmatpush1.bf16.msra.mxu0 %v547
    %673 = vmatprep.subr.bf16.mxu0 0
    %674 = vmatpush1.bf16.msra.mxu0 %v546
    %675 = vmatprep.subr.bf16.mxu0 0
    %676 = vmatpush1.bf16.msra.mxu0 %v545
    %677 = vmatprep.subr.bf16.mxu0 0
    %678 = vmatpush1.bf16.msra.mxu0 %v544
    %679 = vmatprep.subr.bf16.mxu0 0
    %680 = vmatpush1.bf16.msra.mxu0 %v543
    %681 = vmatprep.subr.bf16.mxu0 0
    %682 = vmatpush1.bf16.msra.mxu0 %v542
    %683 = vmatprep.subr.bf16.mxu0 0
    %684 = vmatpush1.bf16.msra.mxu0 %v541
    %685 = vmatprep.subr.bf16.mxu0 0
    %686 = vmatpush2.bf16.msra.mxu0 %v556
    %687 = vmatprep.subr.bf16.mxu0 0
    %688 = vmatpush2.bf16.msra.mxu0 %v555
    %689 = vmatprep.subr.bf16.mxu0 0
    %690 = vmatpush2.bf16.msra.mxu0 %v554
    %691 = vmatprep.subr.bf16.mxu0 0
    %692 = vmatpush2.bf16.msra.mxu0 %v553
    %693 = vmatprep.subr.bf16.mxu0 0
    %694 = vmatpush2.bf16.msra.mxu0 %v552
    %695 = vmatprep.subr.bf16.mxu0 0
    %696 = vmatpush2.bf16.msra.mxu0 %v551
    %697 = vmatprep.subr.bf16.mxu0 0
    %698 = vmatpush2.bf16.msra.mxu0 %v550
    %699 = vmatprep.subr.bf16.mxu0 0
    %700 = vmatpush2.bf16.msra.mxu0 %v549
    %701 = vmatprep.mubr.bf16.mxu0 %v143
    %702 = vmatmul.mubr.bf16.gmra.mxu0 %v142
    %v703 = vpop.f32.mrf.mxu0
    %v704 = vadd.f32 %v283, %v703
    %v705 = vpop.f32.mrf.mxu0
    %v706 = vpop.f32.mrf.mxu0
    %v707 = vpop.f32.mrf.mxu0
    %708 = vdwg.mxu0
    %709 = vmatprep.subr.bf16.mxu0 0
    %710 = vmatpush1.bf16.msra.mxu0 %v564
    %711 = vmatprep.subr.bf16.mxu0 0
    %712 = vmatpush1.bf16.msra.mxu0 %v563
    %713 = vmatprep.subr.bf16.mxu0 0
    %714 = vmatpush1.bf16.msra.mxu0 %v562
    %715 = vmatprep.subr.bf16.mxu0 0
    %716 = vmatpush1.bf16.msra.mxu0 %v561
    %717 = vmatprep.subr.bf16.mxu0 0
    %718 = vmatpush1.bf16.msra.mxu0 %v560
    %719 = vmatprep.subr.bf16.mxu0 0
    %720 = vmatpush1.bf16.msra.mxu0 %v559
    %721 = vmatprep.subr.bf16.mxu0 0
    %722 = vmatpush1.bf16.msra.mxu0 %v558
    %723 = vmatprep.subr.bf16.mxu0 0
    %724 = vmatpush1.bf16.msra.mxu0 %v557
    %725 = vmatprep.subr.bf16.mxu0 0
    %726 = vmatpush2.bf16.msra.mxu0 %v572
    %727 = vmatprep.subr.bf16.mxu0 0
    %728 = vmatpush2.bf16.msra.mxu0 %v571
    %729 = vmatprep.subr.bf16.mxu0 0
    %730 = vmatpush2.bf16.msra.mxu0 %v570
    %731 = vmatprep.subr.bf16.mxu0 0
    %732 = vmatpush2.bf16.msra.mxu0 %v569
    %733 = vmatprep.subr.bf16.mxu0 0
    %734 = vmatpush2.bf16.msra.mxu0 %v568
    %735 = vmatprep.subr.bf16.mxu0 0
    %736 = vmatpush2.bf16.msra.mxu0 %v567
    %737 = vmatprep.subr.bf16.mxu0 0
    %738 = vmatpush2.bf16.msra.mxu0 %v566
    %739 = vmatprep.subr.bf16.mxu0 0
    %740 = vmatpush2.bf16.msra.mxu0 %v565
    %741 = vmatprep.mubr.bf16.mxu0 %v145
    %742 = vmatmul.mubr.bf16.gmra.mxu0 %v144
    %v743 = vpop.f32.mrf.mxu0
    %v744 = vadd.f32 %v704, %v743
    %v745 = vpop.f32.mrf.mxu0
    %v746 = vpop.f32.mrf.mxu0
    %v747 = vpop.f32.mrf.mxu0
    %748 = vdwg.mxu0
    %749 = vmatprep.subr.bf16.mxu0 0
    %750 = vmatpush1.bf16.msra.mxu0 %v580
    %751 = vmatprep.subr.bf16.mxu0 0
    %752 = vmatpush1.bf16.msra.mxu0 %v579
    %753 = vmatprep.subr.bf16.mxu0 0
    %754 = vmatpush1.bf16.msra.mxu0 %v578
    %755 = vmatprep.subr.bf16.mxu0 0
    %756 = vmatpush1.bf16.msra.mxu0 %v577
    %757 = vmatprep.subr.bf16.mxu0 0
    %758 = vmatpush1.bf16.msra.mxu0 %v576
    %759 = vmatprep.subr.bf16.mxu0 0
    %760 = vmatpush1.bf16.msra.mxu0 %v575
    %761 = vmatprep.subr.bf16.mxu0 0
    %762 = vmatpush1.bf16.msra.mxu0 %v574
    %763 = vmatprep.subr.bf16.mxu0 0
    %764 = vmatpush1.bf16.msra.mxu0 %v573
    %765 = vmatprep.subr.bf16.mxu0 0
    %766 = vmatpush2.bf16.msra.mxu0 %v588
    %767 = vmatprep.subr.bf16.mxu0 0
    %768 = vmatpush2.bf16.msra.mxu0 %v587
    %769 = vmatprep.subr.bf16.mxu0 0
    %770 = vmatpush2.bf16.msra.mxu0 %v586
    %771 = vmatprep.subr.bf16.mxu0 0
    %772 = vmatpush2.bf16.msra.mxu0 %v585
    %773 = vmatprep.subr.bf16.mxu0 0
    %774 = vmatpush2.bf16.msra.mxu0 %v584
    %775 = vmatprep.subr.bf16.mxu0 0
    %776 = vmatpush2.bf16.msra.mxu0 %v583
    %777 = vmatprep.subr.bf16.mxu0 0
    %778 = vmatpush2.bf16.msra.mxu0 %v582
    %779 = vmatprep.subr.bf16.mxu0 0
    %780 = vmatpush2.bf16.msra.mxu0 %v581
    %781 = vmatprep.mubr.bf16.mxu0 %v147
    %782 = vmatmul.mubr.bf16.gmra.mxu0 %v146
    %v783 = vpop.f32.mrf.mxu0
    %v784 = vadd.f32 %v744, %v783
    %v785 = vpop.f32.mrf.mxu0
    %v786 = vpop.f32.mrf.mxu0
    %v787 = vpop.f32.mrf.mxu0
    %788 = vdwg.mxu0
    %789 = vmatprep.subr.bf16.mxu0 0
    %790 = vmatpush1.bf16.msra.mxu0 %v596
    %791 = vmatprep.subr.bf16.mxu0 0
    %792 = vmatpush1.bf16.msra.mxu0 %v595
    %793 = vmatprep.subr.bf16.mxu0 0
    %794 = vmatpush1.bf16.msra.mxu0 %v594
    %795 = vmatprep.subr.bf16.mxu0 0
    %796 = vmatpush1.bf16.msra.mxu0 %v593
    %797 = vmatprep.subr.bf16.mxu0 0
    %798 = vmatpush1.bf16.msra.mxu0 %v592
    %799 = vmatprep.subr.bf16.mxu0 0
    %800 = vmatpush1.bf16.msra.mxu0 %v591
    %801 = vmatprep.subr.bf16.mxu0 0
    %802 = vmatpush1.bf16.msra.mxu0 %v590
    %803 = vmatprep.subr.bf16.mxu0 0
    %804 = vmatpush1.bf16.msra.mxu0 %v589
    %805 = vmatprep.subr.bf16.mxu0 0
    %806 = vmatpush2.bf16.msra.mxu0 %v604
    %807 = vmatprep.subr.bf16.mxu0 0
    %808 = vmatpush2.bf16.msra.mxu0 %v603
    %809 = vmatprep.subr.bf16.mxu0 0
    %810 = vmatpush2.bf16.msra.mxu0 %v602
    %811 = vmatprep.subr.bf16.mxu0 0
    %812 = vmatpush2.bf16.msra.mxu0 %v601
    %813 = vmatprep.subr.bf16.mxu0 0
    %814 = vmatpush2.bf16.msra.mxu0 %v600
    %815 = vmatprep.subr.bf16.mxu0 0
    %816 = vmatpush2.bf16.msra.mxu0 %v599
    %817 = vmatprep.subr.bf16.mxu0 0
    %818 = vmatpush2.bf16.msra.mxu0 %v598
    %819 = vmatprep.subr.bf16.mxu0 0
    %820 = vmatpush2.bf16.msra.mxu0 %v597
    %821 = vmatprep.mubr.bf16.mxu0 %v149
    %822 = vmatmul.mubr.bf16.gmra.mxu0 %v148
    %v823 = vpop.f32.mrf.mxu0
    %v824 = vadd.f32 %v784, %v823
    %v825 = vpop.f32.mrf.mxu0
    %v826 = vpop.f32.mrf.mxu0
    %v827 = vpop.f32.mrf.mxu0
    %828 = vdwg.mxu0
    %v829 = vmul.f32 %v824, 0.5
    %v830 = vtanh.pop %v829
    %v831 = vadd.f32 %v830, 1.0
    %v832 = vmul.f32 %v831, 0.5
    %v833 = vpack.c.bf16 %v832, %v832
    %v834 = vld [vmem:[%s3] sm:$0xf]
    %v835 = vld [vmem:[%s3 + $0x4] sm:$0xf]
    %v836 = vld [vmem:[%s3 + $0x8] sm:$0xf]
    %v837 = vld [vmem:[%s3 + $0xc] sm:$0xf]
    %v838 = vld [vmem:[%s3 + $0x10] sm:$0xf]
    %v839 = vld [vmem:[%s3 + $0x14] sm:$0xf]
    %v840 = vld [vmem:[%s3 + $0x18] sm:$0xf]
    %v841 = vld [vmem:[%s3 + $0x1c] sm:$0xf]
    %v842 = vld [vmem:[%s3 + $0x20] sm:$0xf]
    %v843 = vld [vmem:[%s3 + $0x24] sm:$0xf]
    %v844 = vld [vmem:[%s3 + $0x28] sm:$0xf]
    %v845 = vld [vmem:[%s3 + $0x2c] sm:$0xf]
    %v846 = vld [vmem:[%s3 + $0x30] sm:$0xf]
    %v847 = vld [vmem:[%s3 + $0x34] sm:$0xf]
    %v848 = vld [vmem:[%s3 + $0x38] sm:$0xf]
    %v849 = vld [vmem:[%s3 + $0x3c] sm:$0xf]
    %v850 = vld [vmem:[%s4] sm:$0x1]
    %v852 = vlaneseq
    %v853 = vshrl.u32 %v852, 7
    %v854 = vsub.s32 0, %v853
    %v855 = vrot.slane %v850, %v854
    %v873 = vunpack.c.l.b16 %v834
    %v874 = vunpack.c.l.b16 %v835
    %v875 = vunpack.c.l.b16 %v836
    %v876 = vunpack.c.l.b16 %v837
    %v877 = vunpack.c.l.b16 %v838
    %v878 = vunpack.c.l.b16 %v839
    %v879 = vunpack.c.l.b16 %v840
    %v880 = vunpack.c.l.b16 %v841
    %v881 = vunpack.c.l.b16 %v842
    %v882 = vunpack.c.l.b16 %v843
    %v883 = vunpack.c.l.b16 %v844
    %v884 = vunpack.c.l.b16 %v845
    %v885 = vunpack.c.l.b16 %v846
    %v886 = vunpack.c.l.b16 %v847
    %v887 = vunpack.c.l.b16 %v848
    %v888 = vunpack.c.l.b16 %v849
    %v889 = vpack.c.b16 %v874, %v873
    %v890 = vpack.c.b16 %v876, %v875
    %v891 = vpack.c.b16 %v878, %v877
    %v892 = vpack.c.b16 %v880, %v879
    %v893 = vpack.c.b16 %v882, %v881
    %v894 = vpack.c.b16 %v884, %v883
    %v895 = vpack.c.b16 %v886, %v885
    %v896 = vpack.c.b16 %v888, %v887
    %905 = vmatprep.subr.bf16.mxu0 0
    %906 = vmatpush1.bf16.msra.mxu0 %v896
    %907 = vmatprep.subr.bf16.mxu0 0
    %908 = vmatpush1.bf16.msra.mxu0 %v895
    %909 = vmatprep.subr.bf16.mxu0 0
    %910 = vmatpush1.bf16.msra.mxu0 %v894
    %911 = vmatprep.subr.bf16.mxu0 0
    %912 = vmatpush1.bf16.msra.mxu0 %v893
    %913 = vmatprep.subr.bf16.mxu0 0
    %914 = vmatpush1.bf16.msra.mxu0 %v892
    %915 = vmatprep.subr.bf16.mxu0 0
    %916 = vmatpush1.bf16.msra.mxu0 %v891
    %917 = vmatprep.subr.bf16.mxu0 0
    %918 = vmatpush1.bf16.msra.mxu0 %v890
    %919 = vmatprep.subr.bf16.mxu0 0
    %920 = vmatpush1.bf16.msra.mxu0 %v889
    %921 = vmatprep.subr.bf16.mxu0 0
    %922 = vmatpush2.bf16.msra.mxu0 0
    %923 = vmatprep.subr.bf16.mxu0 0
    %924 = vmatpush2.bf16.msra.mxu0 0
    %925 = vmatprep.subr.bf16.mxu0 0
    %926 = vmatpush2.bf16.msra.mxu0 0
    %927 = vmatprep.subr.bf16.mxu0 0
    %928 = vmatpush2.bf16.msra.mxu0 0
    %929 = vmatprep.subr.bf16.mxu0 0
    %930 = vmatpush2.bf16.msra.mxu0 0
    %931 = vmatprep.subr.bf16.mxu0 0
    %932 = vmatpush2.bf16.msra.mxu0 0
    %933 = vmatprep.subr.bf16.mxu0 0
    %934 = vmatpush2.bf16.msra.mxu0 0
    %935 = vmatprep.subr.bf16.mxu0 0
    %936 = vmatpush2.bf16.msra.mxu0 0
    %937 = vmatprep.mubr.bf16.mxu0 0
    %938 = vmatmul.mubr.bf16.gmra.mxu0 %v833
    %v939 = vpop.f32.mrf.mxu0
    %v940 = vadd.f32 %v855, %v939
    %v941 = vpop.f32.mrf.mxu0
    %v942 = vpop.f32.mrf.mxu0
    %v943 = vpop.f32.mrf.mxu0
    %944 = vdwg.mxu0
    %v945 = vmul.f32 %v940, 0.5
    %v946 = vtanh.pop %v945
    %v947 = vadd.f32 %v946, 1.0
    %v948 = vmul.f32 %v947, 0.5
    %v949 = vpack.c.bf16 %v948, %v948
    %v950 = vld [vmem:[%s5] sm:$0xf]
    %v951 = vld [vmem:[%s5 + $0x4] sm:$0xf]
    %v952 = vld [vmem:[%s5 + $0x8] sm:$0xf]
    %v953 = vld [vmem:[%s5 + $0xc] sm:$0xf]
    %v954 = vld [vmem:[%s5 + $0x10] sm:$0xf]
    %v955 = vld [vmem:[%s5 + $0x14] sm:$0xf]
    %v956 = vld [vmem:[%s5 + $0x18] sm:$0xf]
    %v957 = vld [vmem:[%s5 + $0x1c] sm:$0xf]
    %v958 = vld [vmem:[%s5 + $0x20] sm:$0xf]
    %v959 = vld [vmem:[%s5 + $0x24] sm:$0xf]
    %v960 = vld [vmem:[%s5 + $0x28] sm:$0xf]
    %v961 = vld [vmem:[%s5 + $0x2c] sm:$0xf]
    %v962 = vld [vmem:[%s5 + $0x30] sm:$0xf]
    %v963 = vld [vmem:[%s5 + $0x34] sm:$0xf]
    %v964 = vld [vmem:[%s5 + $0x38] sm:$0xf]
    %v965 = vld [vmem:[%s5 + $0x3c] sm:$0xf]
    %v966 = vld [vmem:[%s6] sm:$0x1]
    %v968 = vlaneseq
    %v969 = vshrl.u32 %v968, 7
    %v970 = vsub.s32 0, %v969
    %v971 = vrot.slane %v966, %v970
    %v989 = vunpack.c.l.b16 %v950
    %v990 = vunpack.c.l.b16 %v951
    %v991 = vunpack.c.l.b16 %v952
    %v992 = vunpack.c.l.b16 %v953
    %v993 = vunpack.c.l.b16 %v954
    %v994 = vunpack.c.l.b16 %v955
    %v995 = vunpack.c.l.b16 %v956
    %v996 = vunpack.c.l.b16 %v957
    %v997 = vunpack.c.l.b16 %v958
    %v998 = vunpack.c.l.b16 %v959
    %v999 = vunpack.c.l.b16 %v960
    %v1000 = vunpack.c.l.b16 %v961
    %v1001 = vunpack.c.l.b16 %v962
    %v1002 = vunpack.c.l.b16 %v963
    %v1003 = vunpack.c.l.b16 %v964
    %v1004 = vunpack.c.l.b16 %v965
    %v1005 = vpack.c.b16 %v990, %v989
    %v1006 = vpack.c.b16 %v992, %v991
    %v1007 = vpack.c.b16 %v994, %v993
    %v1008 = vpack.c.b16 %v996, %v995
    %v1009 = vpack.c.b16 %v998, %v997
    %v1010 = vpack.c.b16 %v1000, %v999
    %v1011 = vpack.c.b16 %v1002, %v1001
    %v1012 = vpack.c.b16 %v1004, %v1003
    %1021 = vmatprep.subr.bf16.mxu0 0
    %1022 = vmatpush1.bf16.msra.mxu0 %v1012
    %1023 = vmatprep.subr.bf16.mxu0 0
    %1024 = vmatpush1.bf16.msra.mxu0 %v1011
    %1025 = vmatprep.subr.bf16.mxu0 0
    %1026 = vmatpush1.bf16.msra.mxu0 %v1010
    %1027 = vmatprep.subr.bf16.mxu0 0
    %1028 = vmatpush1.bf16.msra.mxu0 %v1009
    %1029 = vmatprep.subr.bf16.mxu0 0
    %1030 = vmatpush1.bf16.msra.mxu0 %v1008
    %1031 = vmatprep.subr.bf16.mxu0 0
    %1032 = vmatpush1.bf16.msra.mxu0 %v1007
    %1033 = vmatprep.subr.bf16.mxu0 0
    %1034 = vmatpush1.bf16.msra.mxu0 %v1006
    %1035 = vmatprep.subr.bf16.mxu0 0
    %1036 = vmatpush1.bf16.msra.mxu0 %v1005
    %1037 = vmatprep.subr.bf16.mxu0 0
    %1038 = vmatpush2.bf16.msra.mxu0 0
    %1039 = vmatprep.subr.bf16.mxu0 0
    %1040 = vmatpush2.bf16.msra.mxu0 0
    %1041 = vmatprep.subr.bf16.mxu0 0
    %1042 = vmatpush2.bf16.msra.mxu0 0
    %1043 = vmatprep.subr.bf16.mxu0 0
    %1044 = vmatpush2.bf16.msra.mxu0 0
    %1045 = vmatprep.subr.bf16.mxu0 0
    %1046 = vmatpush2.bf16.msra.mxu0 0
    %1047 = vmatprep.subr.bf16.mxu0 0
    %1048 = vmatpush2.bf16.msra.mxu0 0
    %1049 = vmatprep.subr.bf16.mxu0 0
    %1050 = vmatpush2.bf16.msra.mxu0 0
    %1051 = vmatprep.subr.bf16.mxu0 0
    %1052 = vmatpush2.bf16.msra.mxu0 0
    %1053 = vmatprep.mubr.bf16.mxu0 0
    %1054 = vmatmul.mubr.bf16.gmra.mxu0 %v949
    %v1055 = vpop.f32.mrf.mxu0
    %v1056 = vadd.f32 %v971, %v1055
    %v1057 = vpop.f32.mrf.mxu0
    %v1058 = vpop.f32.mrf.mxu0
    %v1059 = vpop.f32.mrf.mxu0
    %1060 = vdwg.mxu0
    %v1061 = vmul.f32 %v1056, 0.5
    %v1062 = vtanh.pop %v1061
    %v1063 = vadd.f32 %v1062, 1.0
    %v1064 = vmul.f32 %v1063, 0.5
    %v1065 = vpack.c.bf16 %v1064, %v1064
    %v1066 = vld [vmem:[%s7] sm:$0xf]
    %v1067 = vld [vmem:[%s7 + $0x4] sm:$0xf]
    %v1068 = vld [vmem:[%s7 + $0x8] sm:$0xf]
    %v1069 = vld [vmem:[%s7 + $0xc] sm:$0xf]
    %v1070 = vld [vmem:[%s7 + $0x10] sm:$0xf]
    %v1071 = vld [vmem:[%s7 + $0x14] sm:$0xf]
    %v1072 = vld [vmem:[%s7 + $0x18] sm:$0xf]
    %v1073 = vld [vmem:[%s7 + $0x1c] sm:$0xf]
    %v1074 = vld [vmem:[%s7 + $0x20] sm:$0xf]
    %v1075 = vld [vmem:[%s7 + $0x24] sm:$0xf]
    %v1076 = vld [vmem:[%s7 + $0x28] sm:$0xf]
    %v1077 = vld [vmem:[%s7 + $0x2c] sm:$0xf]
    %v1078 = vld [vmem:[%s7 + $0x30] sm:$0xf]
    %v1079 = vld [vmem:[%s7 + $0x34] sm:$0xf]
    %v1080 = vld [vmem:[%s7 + $0x38] sm:$0xf]
    %v1081 = vld [vmem:[%s7 + $0x3c] sm:$0xf]
    %v1082 = vld [vmem:[%s8] sm:$0x1]
    %v1084 = vlaneseq
    %v1085 = vshrl.u32 %v1084, 7
    %v1086 = vsub.s32 0, %v1085
    %v1087 = vrot.slane %v1082, %v1086
    %v1105 = vunpack.c.l.b16 %v1066
    %v1106 = vunpack.c.l.b16 %v1067
    %v1107 = vunpack.c.l.b16 %v1068
    %v1108 = vunpack.c.l.b16 %v1069
    %v1109 = vunpack.c.l.b16 %v1070
    %v1110 = vunpack.c.l.b16 %v1071
    %v1111 = vunpack.c.l.b16 %v1072
    %v1112 = vunpack.c.l.b16 %v1073
    %v1113 = vunpack.c.l.b16 %v1074
    %v1114 = vunpack.c.l.b16 %v1075
    %v1115 = vunpack.c.l.b16 %v1076
    %v1116 = vunpack.c.l.b16 %v1077
    %v1117 = vunpack.c.l.b16 %v1078
    %v1118 = vunpack.c.l.b16 %v1079
    %v1119 = vunpack.c.l.b16 %v1080
    %v1120 = vunpack.c.l.b16 %v1081
    %v1121 = vpack.c.b16 %v1106, %v1105
    %v1122 = vpack.c.b16 %v1108, %v1107
    %v1123 = vpack.c.b16 %v1110, %v1109
    %v1124 = vpack.c.b16 %v1112, %v1111
    %v1125 = vpack.c.b16 %v1114, %v1113
    %v1126 = vpack.c.b16 %v1116, %v1115
    %v1127 = vpack.c.b16 %v1118, %v1117
    %v1128 = vpack.c.b16 %v1120, %v1119
    %1137 = vmatprep.subr.bf16.mxu0 0
    %1138 = vmatpush1.bf16.msra.mxu0 %v1128
    %1139 = vmatprep.subr.bf16.mxu0 0
    %1140 = vmatpush1.bf16.msra.mxu0 %v1127
    %1141 = vmatprep.subr.bf16.mxu0 0
    %1142 = vmatpush1.bf16.msra.mxu0 %v1126
    %1143 = vmatprep.subr.bf16.mxu0 0
    %1144 = vmatpush1.bf16.msra.mxu0 %v1125
    %1145 = vmatprep.subr.bf16.mxu0 0
    %1146 = vmatpush1.bf16.msra.mxu0 %v1124
    %1147 = vmatprep.subr.bf16.mxu0 0
    %1148 = vmatpush1.bf16.msra.mxu0 %v1123
    %1149 = vmatprep.subr.bf16.mxu0 0
    %1150 = vmatpush1.bf16.msra.mxu0 %v1122
    %1151 = vmatprep.subr.bf16.mxu0 0
    %1152 = vmatpush1.bf16.msra.mxu0 %v1121
    %1153 = vmatprep.subr.bf16.mxu0 0
    %1154 = vmatpush2.bf16.msra.mxu0 0
    %1155 = vmatprep.subr.bf16.mxu0 0
    %1156 = vmatpush2.bf16.msra.mxu0 0
    %1157 = vmatprep.subr.bf16.mxu0 0
    %1158 = vmatpush2.bf16.msra.mxu0 0
    %1159 = vmatprep.subr.bf16.mxu0 0
    %1160 = vmatpush2.bf16.msra.mxu0 0
    %1161 = vmatprep.subr.bf16.mxu0 0
    %1162 = vmatpush2.bf16.msra.mxu0 0
    %1163 = vmatprep.subr.bf16.mxu0 0
    %1164 = vmatpush2.bf16.msra.mxu0 0
    %1165 = vmatprep.subr.bf16.mxu0 0
    %1166 = vmatpush2.bf16.msra.mxu0 0
    %1167 = vmatprep.subr.bf16.mxu0 0
    %1168 = vmatpush2.bf16.msra.mxu0 0
    %1169 = vmatprep.mubr.bf16.mxu0 0
    %1170 = vmatmul.mubr.bf16.gmra.mxu0 %v1065
    %v1171 = vpop.f32.mrf.mxu0
    %v1172 = vadd.f32 %v1087, %v1171
    %v1173 = vpop.f32.mrf.mxu0
    %v1174 = vpop.f32.mrf.mxu0
    %v1175 = vpop.f32.mrf.mxu0
    %1176 = vdwg.mxu0
    %v1177 = vmul.f32 %v1172, 0.5
    %v1178 = vtanh.pop %v1177
    %v1179 = vadd.f32 %v1178, 1.0
    %v1180 = vmul.f32 %v1179, 0.5
    %v1181 = vpack.c.bf16 %v1180, %v1180
    %v1182 = vld [vmem:[%s9] sm:$0xf]
    %v1183 = vld [vmem:[%s9 + $0x4] sm:$0xf]
    %v1184 = vld [vmem:[%s9 + $0x8] sm:$0xf]
    %v1185 = vld [vmem:[%s9 + $0xc] sm:$0xf]
    %v1186 = vld [vmem:[%s9 + $0x10] sm:$0xf]
    %v1187 = vld [vmem:[%s9 + $0x14] sm:$0xf]
    %v1188 = vld [vmem:[%s9 + $0x18] sm:$0xf]
    %v1189 = vld [vmem:[%s9 + $0x1c] sm:$0xf]
    %v1190 = vld [vmem:[%s9 + $0x20] sm:$0xf]
    %v1191 = vld [vmem:[%s9 + $0x24] sm:$0xf]
    %v1192 = vld [vmem:[%s9 + $0x28] sm:$0xf]
    %v1193 = vld [vmem:[%s9 + $0x2c] sm:$0xf]
    %v1194 = vld [vmem:[%s9 + $0x30] sm:$0xf]
    %v1195 = vld [vmem:[%s9 + $0x34] sm:$0xf]
    %v1196 = vld [vmem:[%s9 + $0x38] sm:$0xf]
    %v1197 = vld [vmem:[%s9 + $0x3c] sm:$0xf]
    %v1198 = vld [vmem:[%s10] sm:$0x1]
    %v1200 = vlaneseq
    %v1201 = vshrl.u32 %v1200, 7
    %v1202 = vsub.s32 0, %v1201
    %v1203 = vrot.slane %v1198, %v1202
    %v1221 = vunpack.c.l.b16 %v1182
    %v1222 = vunpack.c.l.b16 %v1183
    %v1223 = vunpack.c.l.b16 %v1184
    %v1224 = vunpack.c.l.b16 %v1185
    %v1225 = vunpack.c.l.b16 %v1186
    %v1226 = vunpack.c.l.b16 %v1187
    %v1227 = vunpack.c.l.b16 %v1188
    %v1228 = vunpack.c.l.b16 %v1189
    %v1229 = vunpack.c.l.b16 %v1190
    %v1230 = vunpack.c.l.b16 %v1191
    %v1231 = vunpack.c.l.b16 %v1192
    %v1232 = vunpack.c.l.b16 %v1193
    %v1233 = vunpack.c.l.b16 %v1194
    %v1234 = vunpack.c.l.b16 %v1195
    %v1235 = vunpack.c.l.b16 %v1196
    %v1236 = vunpack.c.l.b16 %v1197
    %v1237 = vpack.c.b16 %v1222, %v1221
    %v1238 = vpack.c.b16 %v1224, %v1223
    %v1239 = vpack.c.b16 %v1226, %v1225
    %v1240 = vpack.c.b16 %v1228, %v1227
    %v1241 = vpack.c.b16 %v1230, %v1229
    %v1242 = vpack.c.b16 %v1232, %v1231
    %v1243 = vpack.c.b16 %v1234, %v1233
    %v1244 = vpack.c.b16 %v1236, %v1235
    %1253 = vmatprep.subr.bf16.mxu0 0
    %1254 = vmatpush1.bf16.msra.mxu0 %v1244
    %1255 = vmatprep.subr.bf16.mxu0 0
    %1256 = vmatpush1.bf16.msra.mxu0 %v1243
    %1257 = vmatprep.subr.bf16.mxu0 0
    %1258 = vmatpush1.bf16.msra.mxu0 %v1242
    %1259 = vmatprep.subr.bf16.mxu0 0
    %1260 = vmatpush1.bf16.msra.mxu0 %v1241
    %1261 = vmatprep.subr.bf16.mxu0 0
    %1262 = vmatpush1.bf16.msra.mxu0 %v1240
    %1263 = vmatprep.subr.bf16.mxu0 0
    %1264 = vmatpush1.bf16.msra.mxu0 %v1239
    %1265 = vmatprep.subr.bf16.mxu0 0
    %1266 = vmatpush1.bf16.msra.mxu0 %v1238
    %1267 = vmatprep.subr.bf16.mxu0 0
    %1268 = vmatpush1.bf16.msra.mxu0 %v1237
    %1269 = vmatprep.subr.bf16.mxu0 0
    %1270 = vmatpush2.bf16.msra.mxu0 0
    %1271 = vmatprep.subr.bf16.mxu0 0
    %1272 = vmatpush2.bf16.msra.mxu0 0
    %1273 = vmatprep.subr.bf16.mxu0 0
    %1274 = vmatpush2.bf16.msra.mxu0 0
    %1275 = vmatprep.subr.bf16.mxu0 0
    %1276 = vmatpush2.bf16.msra.mxu0 0
    %1277 = vmatprep.subr.bf16.mxu0 0
    %1278 = vmatpush2.bf16.msra.mxu0 0
    %1279 = vmatprep.subr.bf16.mxu0 0
    %1280 = vmatpush2.bf16.msra.mxu0 0
    %1281 = vmatprep.subr.bf16.mxu0 0
    %1282 = vmatpush2.bf16.msra.mxu0 0
    %1283 = vmatprep.subr.bf16.mxu0 0
    %1284 = vmatpush2.bf16.msra.mxu0 0
    %1285 = vmatprep.mubr.bf16.mxu0 0
    %1286 = vmatmul.mubr.bf16.gmra.mxu0 %v1181
    %v1287 = vpop.f32.mrf.mxu0
    %v1288 = vadd.f32 %v1203, %v1287
    %v1289 = vpop.f32.mrf.mxu0
    %v1290 = vpop.f32.mrf.mxu0
    %v1291 = vpop.f32.mrf.mxu0
    %1292 = vdwg.mxu0
    %v1293 = vmul.f32 %v1288, 0.5
    %v1294 = vtanh.pop %v1293
    %v1295 = vadd.f32 %v1294, 1.0
    %v1296 = vmul.f32 %v1295, 0.5
    %v1297 = vpack.c.bf16 %v1296, %v1296
    %v1298 = vld [vmem:[%s11] sm:$0xf]
    %v1299 = vld [vmem:[%s11 + $0x4] sm:$0xf]
    %v1300 = vld [vmem:[%s11 + $0x8] sm:$0xf]
    %v1301 = vld [vmem:[%s11 + $0xc] sm:$0xf]
    %v1302 = vld [vmem:[%s11 + $0x10] sm:$0xf]
    %v1303 = vld [vmem:[%s11 + $0x14] sm:$0xf]
    %v1304 = vld [vmem:[%s11 + $0x18] sm:$0xf]
    %v1305 = vld [vmem:[%s11 + $0x1c] sm:$0xf]
    %v1306 = vld [vmem:[%s11 + $0x20] sm:$0xf]
    %v1307 = vld [vmem:[%s11 + $0x24] sm:$0xf]
    %v1308 = vld [vmem:[%s11 + $0x28] sm:$0xf]
    %v1309 = vld [vmem:[%s11 + $0x2c] sm:$0xf]
    %v1310 = vld [vmem:[%s11 + $0x30] sm:$0xf]
    %v1311 = vld [vmem:[%s11 + $0x34] sm:$0xf]
    %v1312 = vld [vmem:[%s11 + $0x38] sm:$0xf]
    %v1313 = vld [vmem:[%s11 + $0x3c] sm:$0xf]
    %v1314 = vld [vmem:[%s12] sm:$0x1]
    %v1316 = vlaneseq
    %v1317 = vshrl.u32 %v1316, 7
    %v1318 = vsub.s32 0, %v1317
    %v1319 = vrot.slane %v1314, %v1318
    %v1337 = vunpack.c.l.b16 %v1298
    %v1338 = vunpack.c.l.b16 %v1299
    %v1339 = vunpack.c.l.b16 %v1300
    %v1340 = vunpack.c.l.b16 %v1301
    %v1341 = vunpack.c.l.b16 %v1302
    %v1342 = vunpack.c.l.b16 %v1303
    %v1343 = vunpack.c.l.b16 %v1304
    %v1344 = vunpack.c.l.b16 %v1305
    %v1345 = vunpack.c.l.b16 %v1306
    %v1346 = vunpack.c.l.b16 %v1307
    %v1347 = vunpack.c.l.b16 %v1308
    %v1348 = vunpack.c.l.b16 %v1309
    %v1349 = vunpack.c.l.b16 %v1310
    %v1350 = vunpack.c.l.b16 %v1311
    %v1351 = vunpack.c.l.b16 %v1312
    %v1352 = vunpack.c.l.b16 %v1313
    %v1353 = vpack.c.b16 %v1338, %v1337
    %v1354 = vpack.c.b16 %v1340, %v1339
    %v1355 = vpack.c.b16 %v1342, %v1341
    %v1356 = vpack.c.b16 %v1344, %v1343
    %v1357 = vpack.c.b16 %v1346, %v1345
    %v1358 = vpack.c.b16 %v1348, %v1347
    %v1359 = vpack.c.b16 %v1350, %v1349
    %v1360 = vpack.c.b16 %v1352, %v1351
    %1369 = vmatprep.subr.bf16.mxu0 0
    %1370 = vmatpush1.bf16.msra.mxu0 %v1360
    %1371 = vmatprep.subr.bf16.mxu0 0
    %1372 = vmatpush1.bf16.msra.mxu0 %v1359
    %1373 = vmatprep.subr.bf16.mxu0 0
    %1374 = vmatpush1.bf16.msra.mxu0 %v1358
    %1375 = vmatprep.subr.bf16.mxu0 0
    %1376 = vmatpush1.bf16.msra.mxu0 %v1357
    %1377 = vmatprep.subr.bf16.mxu0 0
    %1378 = vmatpush1.bf16.msra.mxu0 %v1356
    %1379 = vmatprep.subr.bf16.mxu0 0
    %1380 = vmatpush1.bf16.msra.mxu0 %v1355
    %1381 = vmatprep.subr.bf16.mxu0 0
    %1382 = vmatpush1.bf16.msra.mxu0 %v1354
    %1383 = vmatprep.subr.bf16.mxu0 0
    %1384 = vmatpush1.bf16.msra.mxu0 %v1353
    %1385 = vmatprep.subr.bf16.mxu0 0
    %1386 = vmatpush2.bf16.msra.mxu0 0
    %1387 = vmatprep.subr.bf16.mxu0 0
    %1388 = vmatpush2.bf16.msra.mxu0 0
    %1389 = vmatprep.subr.bf16.mxu0 0
    %1390 = vmatpush2.bf16.msra.mxu0 0
    %1391 = vmatprep.subr.bf16.mxu0 0
    %1392 = vmatpush2.bf16.msra.mxu0 0
    %1393 = vmatprep.subr.bf16.mxu0 0
    %1394 = vmatpush2.bf16.msra.mxu0 0
    %1395 = vmatprep.subr.bf16.mxu0 0
    %1396 = vmatpush2.bf16.msra.mxu0 0
    %1397 = vmatprep.subr.bf16.mxu0 0
    %1398 = vmatpush2.bf16.msra.mxu0 0
    %1399 = vmatprep.subr.bf16.mxu0 0
    %1400 = vmatpush2.bf16.msra.mxu0 0
    %1401 = vmatprep.mubr.bf16.mxu0 0
    %1402 = vmatmul.mubr.bf16.gmra.mxu0 %v1297
    %v1403 = vpop.f32.mrf.mxu0
    %v1404 = vadd.f32 %v1319, %v1403
    %v1405 = vpop.f32.mrf.mxu0
    %v1406 = vpop.f32.mrf.mxu0
    %v1407 = vpop.f32.mrf.mxu0
    %1408 = vdwg.mxu0
    %1409 = vst [vmem:[#allocation2] sm:$0xff] %v1404
    // Predicated region
    $region54: #{mlp_forward.1} parent=1 // pred_check
      _
    $region55: #{mlp_forward.1} parent=1 // pred_check_branch
      %1411 = sbr.rel (0) target = $region57
    $region56: #{mlp_forward.1} parent=1 // pred_region
      %s1413 = ssub.s32 128, 32
      %1414 = vsyncadd [#allocation3], %s1413
      %s1415 = sshll.u32 [#allocation2], 4
      %s1416 = int_to_ptr.vmem [resolvable:$true] %s1415
      %1421 = dma.vmem_to_hbm [thread:$0]  %s1416, 32, %s13, [#allocation3], 32, 32, 2
    $region57: #{mlp_forward.1} parent=1 // pred_fallthru
      _
    // Predicated region
    $region58: #{mlp_forward.1} parent=1 // pred_check
      _
    $region59: #{mlp_forward.1} parent=1 // pred_check_branch
      %1423 = sbr.rel (0) target = $region61
    $region60: #{mlp_forward.1} parent=1 // pred_region
      %1424 = dma.done [#allocation3], 128
    $region61: #{mlp_forward.1} parent=1 // pred_fallthru
      _
    %1425 = vsyncpa [#allocation3], 1

</llo_original>
